<compile_context>
chip_gen: v5e
topology: v5e:2x2
jax: 0.10.0
libtpu: 0.0.40
codegen_flags: <defaults>
</compile_context>

<pallas_src>
import numpy as np
import jax
import jax.numpy as jnp
from jax.experimental import pallas as pl
from jax.experimental.pallas import tpu as pltpu


def _round_up(x, m):
    return (x + m - 1) // m * m


def _text_cls_kernel(bounds_ref, tok_emb_ref, w_ref, b_ref, out_ref):
    # bounds_ref  : VMEM (TB, 2) int32         per-bag [start, end) token ranges
    # tok_emb_ref : VMEM (N_pad, D_pad)        gathered token embeddings (bf16/f32)
    # w_ref       : VMEM (D_pad, C_pad)        fc weight, pre-transposed
    # b_ref       : VMEM (1, C_pad) f32        fc bias
    # out_ref     : VMEM (TB, C_pad) f32       logits for this bag tile
    tb = out_ref.shape[0]
    n_pad = tok_emb_ref.shape[0]

    bounds = bounds_ref[...]
    starts = bounds[:, 0:1]                                   # (TB, 1)
    ends = bounds[:, 1:2]                                     # (TB, 1)

    # Exact 0/1 bag-selection matrix (TB, N_pad); padded tokens / padded bags
    # select nothing (empty bag -> zero row, matching EmbeddingBag(mode='mean')).
    tok_idx = jax.lax.broadcasted_iota(jnp.int32, (tb, n_pad), 1)
    sel = jnp.logical_and(tok_idx >= starts, tok_idx < ends)
    sel = sel.astype(jnp.float32).astype(tok_emb_ref.dtype)   # 0/1 exact in bf16

    # Bag sums on the MXU (f32 accumulation), then mean via exact f32 VPU scaling.
    sums = jnp.dot(sel, tok_emb_ref[...],
                   preferred_element_type=jnp.float32)        # (TB, D_pad) f32
    inv_cnt = 1.0 / jnp.maximum(ends - starts, 1).astype(jnp.float32)
    means = sums * inv_cnt

    logits = jnp.dot(means.astype(w_ref.dtype), w_ref[...],
                     preferred_element_type=jnp.float32)      # (TB, C_pad) f32
    out_ref[...] = (logits + b_ref[...]).astype(out_ref.dtype)


def text_classifier_forward(text, offsets, emb_table, fc_w, fc_b, *,
                            bags_per_tile=128, compute_dtype=jnp.bfloat16):
    """EmbeddingBag(mode='mean') -> Linear forward pass as a Pallas TPU kernel."""
    n_tokens = int(text.shape[0])
    batch = int(offsets.shape[0])
    vocab, embed_dim = emb_table.shape
    num_class = fc_w.shape[0]

    tb = min(int(bags_per_tile), _round_up(max(batch, 1), 8))   # bags per grid step
    b_pad = _round_up(max(batch, 1), tb)
    n_pad = _round_up(max(n_tokens, 1), 128)
    d_pad = _round_up(embed_dim, 128)
    c_pad = _round_up(num_class, 128)

    # Per-bag [start, end) ranges merged into one (B_pad, 2) int32 block.
    # Padded bags get start == end == 0 -> empty -> zero embedding row.
    offs = offsets.astype(jnp.int32)
    ends_real = jnp.concatenate([offs[1:], jnp.array([n_tokens], jnp.int32)])
    bounds = jnp.zeros((b_pad, 2), jnp.int32)
    bounds = bounds.at[:batch, 0].set(offs).at[:batch, 1].set(ends_real)

    # Grid-invariant operands (wrapper-side layout plumbing; the vocab-sized table
    # is only touched by the XLA gather, never by the kernel).
    tok_emb = jnp.zeros((n_pad, d_pad), compute_dtype)
    tok_emb = tok_emb.at[:n_tokens, :embed_dim].set(
        jnp.take(emb_table, text.astype(jnp.int32), axis=0).astype(compute_dtype))
    w_t = jnp.zeros((d_pad, c_pad), compute_dtype).at[:embed_dim, :num_class].set(
        fc_w.T.astype(compute_dtype))
    b_p = jnp.zeros((1, c_pad), jnp.float32).at[0, :num_class].set(
        fc_b.astype(jnp.float32))

    itemsize = jnp.dtype(compute_dtype).itemsize
    cost = pl.CostEstimate(
        flops=2 * b_pad * n_pad * d_pad + 2 * b_pad * d_pad * c_pad,
        transcendentals=0,
        bytes_accessed=(n_pad * d_pad * itemsize + d_pad * c_pad * itemsize
                        + c_pad * 4 + b_pad * 2 * 4 + b_pad * c_pad * 4),
    )
    step_bytes = ((n_pad * d_pad + d_pad * c_pad) * itemsize + c_pad * 4
                  + tb * 2 * 4 + tb * c_pad * 4)
    vmem_limit = int(min(max(4 * step_bytes, 32 << 20), 64 << 20))

    cp_cls = getattr(pltpu, "CompilerParams", None) or pltpu.TPUCompilerParams
    compiler_params = cp_cls(
        dimension_semantics=("parallel",),   # disjoint output tiles -> both v7x TCs
        vmem_limit_bytes=vmem_limit,
    )

    def _const_spec(shape, single_buffer):
        # Grid-invariant operand: fetched once; single-buffer it when supported to
        # halve its VMEM residency (matters at real scale on v7x/v5e).
        if single_buffer and hasattr(pl, "Buffered"):
            return pl.BlockSpec(shape, lambda i: (0, 0), pipeline_mode=pl.Buffered(1))
        return pl.BlockSpec(shape, lambda i: (0, 0))

    def _run(single_buffer):
        grid_spec = pltpu.PrefetchScalarGridSpec(
            num_scalar_prefetch=0,
            grid=(b_pad // tb,),
            in_specs=[
                pl.BlockSpec((tb, 2), lambda i: (i, 0)),        # bag [start, end)
                _const_spec((n_pad, d_pad), single_buffer),     # token embeddings
                _const_spec((d_pad, c_pad), single_buffer),     # fc weight^T
                _const_spec((1, c_pad), single_buffer),         # fc bias
            ],
            out_specs=pl.BlockSpec((tb, c_pad), lambda i: (i, 0)),
        )
        return pl.pallas_call(
            _text_cls_kernel,
            out_shape=jax.ShapeDtypeStruct((b_pad, c_pad), jnp.float32),
            grid_spec=grid_spec,
            compiler_params=compiler_params,
            cost_estimate=cost,
        )(bounds, tok_emb, w_t, b_p)

    try:
        out = _run(single_buffer=True)
    except Exception:
        # pipeline_mode=pl.Buffered(1) unsupported on this JAX build -> fall back to
        # default double-buffering (identical results, just more VMEM for invariants).
        out = _run(single_buffer=False)

    return out[:batch, :num_class]


def _reference(text, offsets, emb_table, fc_w, fc_b):
    n_tokens = text.shape[0]
    batch = offsets.shape[0]
    offs = np.concatenate([offsets, [n_tokens]])
    rows = []
    for b in range(batch):
        s, e = int(offs[b]), int(offs[b + 1])
        if e > s:
            rows.append(emb_table[text[s:e]].mean(axis=0))
        else:
            rows.append(np.zeros(emb_table.shape[1], np.float32))
    return np.stack(rows) @ fc_w.T + fc_b


if __name__ == "__main__":
    # Small shapes consistent with the module: 4 news classes, tiny vocab/embed dim.
    vocab_size = 64
    embed_dim = 32
    num_class = 4          # len(ag_news_label)
    batch = 4              # number of bags
    n_tokens = 20          # total flattened token count

    key = jax.random.PRNGKey(0)
    k_emb, k_w, k_txt = jax.random.split(key, 3)

    initrange = 0.5
    emb_table = jax.random.uniform(
        k_emb, (vocab_size, embed_dim), jnp.float32, -initrange, initrange)
    fc_w = jax.random.uniform(
        k_w, (num_class, embed_dim), jnp.float32, -initrange, initrange)
    fc_b = jnp.zeros((num_class,), jnp.float32)

    text = jax.random.randint(k_txt, (n_tokens,), 0, vocab_size, jnp.int32)
    offsets = jnp.array([0, 5, 9, 14], jnp.int32)  # bag start offsets (B=4)

    out = text_classifier_forward(text, offsets, emb_table, fc_w, fc_b)
    out = jax.block_until_ready(out)

    ref = _reference(np.asarray(text), np.asarray(offsets), np.asarray(emb_table),
                     np.asarray(fc_w), np.asarray(fc_b))
    # bf16 MXU operands (f32 accumulation) -> compare at bf16-appropriate tolerance.
    np.testing.assert_allclose(np.asarray(out), ref, rtol=5e-2, atol=5e-2)

    print("KERNEL_OK")
</pallas_src>

<mosaic_0001>
module attributes {stable_mosaic.version = 11 : i64} {
  func.func @_text_cls_kernel(%arg0: i32, %arg1: memref<8x2xi32, #tpu.memory_space<vmem>>, %arg2: memref<128x128xbf16, #tpu.memory_space<vmem>>, %arg3: memref<128x128xbf16, #tpu.memory_space<vmem>>, %arg4: memref<1x128xf32, #tpu.memory_space<vmem>>, %arg5: memref<8x128xf32, #tpu.memory_space<vmem>>) attributes {dimension_semantics = [#tpu.dimension_semantics<parallel>], iteration_bounds = array<i64: 1>, scalar_prefetch = 0 : i64, scratch_operands = 0 : i64, tpu.core_type = #tpu.core_type<tc>, window_params = [{transform_indices = @transform_0, window_bounds = array<i64: 8, 2>}, {pipeline_mode = #tpu.pipeline_mode<synchronous>, transform_indices = @transform_1, window_bounds = array<i64: 128, 128>}, {pipeline_mode = #tpu.pipeline_mode<synchronous>, transform_indices = @transform_2, window_bounds = array<i64: 128, 128>}, {pipeline_mode = #tpu.pipeline_mode<synchronous>, transform_indices = @transform_3, window_bounds = array<i64: 1, 128>}, {transform_indices = @transform_4, window_bounds = array<i64: 8, 128>}]} {
    %c0 = arith.constant 0 : index
    %c0_0 = arith.constant 0 : index
    %0 = vector.load %arg1[%c0, %c0_0] : memref<8x2xi32, #tpu.memory_space<vmem>>, vector<8x2xi32>
    %1 = vector.extract_strided_slice %0 {offsets = [0, 0], sizes = [8, 1], strides = [1, 1]} : vector<8x2xi32> to vector<8x1xi32>
    %2 = vector.extract_strided_slice %0 {offsets = [0, 1], sizes = [8, 1], strides = [1, 1]} : vector<8x2xi32> to vector<8x1xi32>
    %3 = tpu.iota {dimensions = array<i32: 1>} : vector<8x128xi32>
    %4 = vector.broadcast %1 : vector<8x1xi32> to vector<8x128xi32>
    %5 = arith.cmpi sge, %3, %4 : vector<8x128xi32>
    %6 = vector.broadcast %2 : vector<8x1xi32> to vector<8x128xi32>
    %7 = arith.cmpi slt, %3, %6 : vector<8x128xi32>
    %8 = arith.andi %5, %7 : vector<8x128xi1>
    %9 = arith.extui %8 : vector<8x128xi1> to vector<8x128xi32>
    %10 = arith.sitofp %9 : vector<8x128xi32> to vector<8x128xf32>
    %11 = arith.truncf %10 : vector<8x128xf32> to vector<8x128xbf16>
    %c0_1 = arith.constant 0 : index
    %c0_2 = arith.constant 0 : index
    %12 = vector.load %arg2[%c0_1, %c0_2] : memref<128x128xbf16, #tpu.memory_space<vmem>>, vector<128x128xbf16>
    %cst = arith.constant dense<0.000000e+00> : vector<8x128xf32>
    %13 = tpu.matmul %11, %12, %cst {dimension_numbers = #tpu.dot_dimension_numbers<[1], [0], [0], [1], [0, 0, 1, 1], [], []>} : vector<8x128xbf16>, vector<128x128xbf16>, vector<8x128xf32> -> vector<8x128xf32>
    %14 = arith.subi %2, %1 : vector<8x1xi32>
    %c1_i32 = arith.constant 1 : i32
    %15 = vector.broadcast %c1_i32 : i32 to vector<8x1xi32>
    %16 = arith.maxsi %14, %15 : vector<8x1xi32>
    %17 = arith.sitofp %16 : vector<8x1xi32> to vector<8x1xf32>
    %cst_3 = arith.constant 1.000000e+00 : f32
    %18 = vector.broadcast %cst_3 : f32 to vector<8x1xf32>
    %19 = arith.divf %18, %17 : vector<8x1xf32>
    %20 = vector.broadcast %19 : vector<8x1xf32> to vector<8x128xf32>
    %21 = arith.mulf %13, %20 : vector<8x128xf32>
    %22 = arith.truncf %21 : vector<8x128xf32> to vector<8x128xbf16>
    %c0_4 = arith.constant 0 : index
    %c0_5 = arith.constant 0 : index
    %23 = vector.load %arg3[%c0_4, %c0_5] : memref<128x128xbf16, #tpu.memory_space<vmem>>, vector<128x128xbf16>
    %cst_6 = arith.constant dense<0.000000e+00> : vector<8x128xf32>
    %24 = tpu.matmul %22, %23, %cst_6 {dimension_numbers = #tpu.dot_dimension_numbers<[1], [0], [0], [1], [0, 0, 1, 1], [], []>} : vector<8x128xbf16>, vector<128x128xbf16>, vector<8x128xf32> -> vector<8x128xf32>
    %c0_7 = arith.constant 0 : index
    %c0_8 = arith.constant 0 : index
    %25 = vector.load %arg4[%c0_7, %c0_8] : memref<1x128xf32, #tpu.memory_space<vmem>>, vector<1x128xf32>
    %26 = vector.broadcast %25 : vector<1x128xf32> to vector<8x128xf32>
    %27 = arith.addf %24, %26 : vector<8x128xf32>
    %c0_9 = arith.constant 0 : index
    %c0_10 = arith.constant 0 : index
    %28 = vector.load %arg5[%c0_9, %c0_10] : memref<8x128xf32, #tpu.memory_space<vmem>>, vector<8x128xf32>
    tpu.vector_store %arg5[%c0_9, %c0_10], %27 {strides = array<i32>} : memref<8x128xf32, #tpu.memory_space<vmem>>, vector<8x128xf32>,
    return
  }
  func.func @transform_0(%arg0: i32) -> (i32, i32) {
    %c0_i32 = arith.constant 0 : i32
    %c0_i32_0 = arith.constant 0 : i32
    return %arg0, %c0_i32 : i32, i32
  }
  func.func @transform_1(%arg0: i32) -> (i32, i32) {
    %c0_i32 = arith.constant 0 : i32
    %c0_i32_0 = arith.constant 0 : i32
    %c0_i32_1 = arith.constant 0 : i32
    return %c0_i32, %c0_i32_0 : i32, i32
  }
  func.func @transform_2(%arg0: i32) -> (i32, i32) {
    %c0_i32 = arith.constant 0 : i32
    %c0_i32_0 = arith.constant 0 : i32
    %c0_i32_1 = arith.constant 0 : i32
    return %c0_i32, %c0_i32_0 : i32, i32
  }
  func.func @transform_3(%arg0: i32) -> (i32, i32) {
    %c0_i32 = arith.constant 0 : i32
    %c0_i32_0 = arith.constant 0 : i32
    %c0_i32_1 = arith.constant 0 : i32
    return %c0_i32, %c0_i32_0 : i32, i32
  }
  func.func @transform_4(%arg0: i32) -> (i32, i32) {
    %c0_i32 = arith.constant 0 : i32
    %c0_i32_0 = arith.constant 0 : i32
    return %arg0, %c0_i32 : i32, i32
  }
}

module attributes {stable_mosaic.version = 11 : i64} {
  func.func @_text_cls_kernel(%arg0: i32, %arg1: memref<8x2xi32, #tpu.memory_space<vmem>>, %arg2: memref<128x128xbf16, #tpu.memory_space<vmem>>, %arg3: memref<128x128xbf16, #tpu.memory_space<vmem>>, %arg4: memref<1x128xf32, #tpu.memory_space<vmem>>, %arg5: memref<8x128xf32, #tpu.memory_space<vmem>>) attributes {dimension_semantics = [#tpu.dimension_semantics<parallel>], iteration_bounds = array<i64: 1>, scalar_prefetch = 0 : i64, scratch_operands = 0 : i64, tpu.core_type = #tpu.core_type<tc>, window_params = [{transform_indices = @transform_0, window_bounds = array<i64: 8, 2>}, {pipeline_mode = #tpu.pipeline_mode<synchronous>, transform_indices = @transform_1, window_bounds = array<i64: 128, 128>}, {pipeline_mode = #tpu.pipeline_mode<synchronous>, transform_indices = @transform_2, window_bounds = array<i64: 128, 128>}, {pipeline_mode = #tpu.pipeline_mode<synchronous>, transform_indices = @transform_3, window_bounds = array<i64: 1, 128>}, {transform_indices = @transform_4, window_bounds = array<i64: 8, 128>}]} {
    %c0 = arith.constant 0 : index
    %c0_0 = arith.constant 0 : index
    %0 = vector.load %arg1[%c0, %c0_0] : memref<8x2xi32, #tpu.memory_space<vmem>>, vector<8x2xi32>
    %1 = vector.extract_strided_slice %0 {offsets = [0, 0], sizes = [8, 1], strides = [1, 1]} : vector<8x2xi32> to vector<8x1xi32>
    %2 = vector.extract_strided_slice %0 {offsets = [0, 1], sizes = [8, 1], strides = [1, 1]} : vector<8x2xi32> to vector<8x1xi32>
    %3 = tpu.iota {dimensions = array<i32: 1>} : vector<8x128xi32>
    %4 = vector.broadcast %1 : vector<8x1xi32> to vector<8x128xi32>
    %5 = arith.cmpi sge, %3, %4 : vector<8x128xi32>
    %6 = vector.broadcast %2 : vector<8x1xi32> to vector<8x128xi32>
    %7 = arith.cmpi slt, %3, %6 : vector<8x128xi32>
    %8 = arith.andi %5, %7 : vector<8x128xi1>
    %9 = arith.extui %8 : vector<8x128xi1> to vector<8x128xi32>
    %10 = arith.sitofp %9 : vector<8x128xi32> to vector<8x128xf32>
    %11 = arith.truncf %10 : vector<8x128xf32> to vector<8x128xbf16>
    %c0_1 = arith.constant 0 : index
    %c0_2 = arith.constant 0 : index
    %12 = vector.load %arg2[%c0_1, %c0_2] : memref<128x128xbf16, #tpu.memory_space<vmem>>, vector<128x128xbf16>
    %cst = arith.constant dense<0.000000e+00> : vector<8x128xf32>
    %13 = tpu.matmul %11, %12, %cst {dimension_numbers = #tpu.dot_dimension_numbers<[1], [0], [0], [1], [0, 0, 1, 1], [], []>} : vector<8x128xbf16>, vector<128x128xbf16>, vector<8x128xf32> -> vector<8x128xf32>
    %14 = arith.subi %2, %1 : vector<8x1xi32>
    %c1_i32 = arith.constant 1 : i32
    %15 = vector.broadcast %c1_i32 : i32 to vector<8x1xi32>
    %16 = arith.maxsi %14, %15 : vector<8x1xi32>
    %17 = arith.sitofp %16 : vector<8x1xi32> to vector<8x1xf32>
    %cst_3 = arith.constant 1.000000e+00 : f32
    %18 = vector.broadcast %cst_3 : f32 to vector<8x1xf32>
    %19 = arith.divf %18, %17 : vector<8x1xf32>
    %20 = vector.broadcast %19 : vector<8x1xf32> to vector<8x128xf32>
    %21 = arith.mulf %13, %20 : vector<8x128xf32>
    %22 = arith.truncf %21 : vector<8x128xf32> to vector<8x128xbf16>
    %c0_4 = arith.constant 0 : index
    %c0_5 = arith.constant 0 : index
    %23 = vector.load %arg3[%c0_4, %c0_5] : memref<128x128xbf16, #tpu.memory_space<vmem>>, vector<128x128xbf16>
    %cst_6 = arith.constant dense<0.000000e+00> : vector<8x128xf32>
    %24 = tpu.matmul %22, %23, %cst_6 {dimension_numbers = #tpu.dot_dimension_numbers<[1], [0], [0], [1], [0, 0, 1, 1], [], []>} : vector<8x128xbf16>, vector<128x128xbf16>, vector<8x128xf32> -> vector<8x128xf32>
    %c0_7 = arith.constant 0 : index
    %c0_8 = arith.constant 0 : index
    %25 = vector.load %arg4[%c0_7, %c0_8] : memref<1x128xf32, #tpu.memory_space<vmem>>, vector<1x128xf32>
    %26 = vector.broadcast %25 : vector<1x128xf32> to vector<8x128xf32>
    %27 = arith.addf %24, %26 : vector<8x128xf32>
    %c0_9 = arith.constant 0 : index
    %c0_10 = arith.constant 0 : index
    %28 = vector.load %arg5[%c0_9, %c0_10] : memref<8x128xf32, #tpu.memory_space<vmem>>, vector<8x128xf32>
    tpu.vector_store %arg5[%c0_9, %c0_10], %27 {strides = array<i32>} : memref<8x128xf32, #tpu.memory_space<vmem>>, vector<8x128xf32>,
    return
  }
  func.func @transform_0(%arg0: i32) -> (i32, i32) {
    %c0_i32 = arith.constant 0 : i32
    %c0_i32_0 = arith.constant 0 : i32
    return %arg0, %c0_i32 : i32, i32
  }
  func.func @transform_1(%arg0: i32) -> (i32, i32) {
    %c0_i32 = arith.constant 0 : i32
    %c0_i32_0 = arith.constant 0 : i32
    %c0_i32_1 = arith.constant 0 : i32
    return %c0_i32, %c0_i32_0 : i32, i32
  }
  func.func @transform_2(%arg0: i32) -> (i32, i32) {
    %c0_i32 = arith.constant 0 : i32
    %c0_i32_0 = arith.constant 0 : i32
    %c0_i32_1 = arith.constant 0 : i32
    return %c0_i32, %c0_i32_0 : i32, i32
  }
  func.func @transform_3(%arg0: i32) -> (i32, i32) {
    %c0_i32 = arith.constant 0 : i32
    %c0_i32_0 = arith.constant 0 : i32
    %c0_i32_1 = arith.constant 0 : i32
    return %c0_i32, %c0_i32_0 : i32, i32
  }
  func.func @transform_4(%arg0: i32) -> (i32, i32) {
    %c0_i32 = arith.constant 0 : i32
    %c0_i32_0 = arith.constant 0 : i32
    return %arg0, %c0_i32 : i32, i32
  }
}

</mosaic_0001>

<llo_original>
// kernel: tpu_custom_call.1
$region0: #{tpu_custom_call.1}
  #allocation0 [shape = 'u32[]', space=smem, size = 0x4, offset = 0x4, fixed_abs, tag = 'smem constant byte address 0x4 - core index']
  #allocation1 [shape = 'u32[72,128]{1,0:T(1,128)}', space=vmem, size = 0x9000, scoped, tag = 'internal scratch']
  %s0 = inlined_call_operand.vmem [shape: s32[8,2], index: 0, kind: input, shape index: {}]
  %s1 = inlined_call_operand.hbm [shape: bf16[128,128], index: 1, kind: input, shape index: {}]
  %s2 = inlined_call_operand.hbm [shape: bf16[128,128], index: 2, kind: input, shape index: {}]
  %s3 = inlined_call_operand.vmem [shape: f32[1,128], index: 3, kind: input, shape index: {}]
  %s4 = inlined_call_operand.hbm [shape: f32[8,128], index: 4, kind: output, shape index: {}]
  %s5 = sld [smem:[#allocation0]]
  $region34: #{tpu_custom_call.1} parent=0
    _
  %s7 = ssub.s32 1, %s5
  %s8 = scalar_select 0, %s7, %s5
  $region1: #{tpu_custom_call.1} parent=0
    #allocation2 [shape = 'u8[32768]{0}', space=vmem, size = 0x8000, scoped, tag = 'input window, operand 1, single buffered']
    #allocation3 [shape = 's32[1]{0}', space=sflag, size = 0x4, scoped, tag = 'scoped memory for tpu_custom_call.1']
    #allocation4 [shape = 's32[1]{0}', space=sflag, size = 0x4, scoped, tag = 'scoped memory for tpu_custom_call.1']
    #allocation5 [shape = 'u8[32768]{0}', space=vmem, size = 0x8000, scoped, tag = 'input window, operand 2, single buffered']
    #allocation6 [shape = 's32[1]{0}', space=sflag, size = 0x4, scoped, tag = 'scoped memory for tpu_custom_call.1']
    #allocation7 [shape = 'u8[4096]{0}', space=vmem, size = 0x1000, scoped, tag = 'output window, operand 0, single buffered']
    %9 = vsyncpa [#allocation3], 0
    %10 = vsyncpa [#allocation6], 0
    %11 = vsyncpa [#allocation4], 0
    // Predicated region
    $region2: #{tpu_custom_call.1} parent=1 // pred_check
      _
    $region3: #{tpu_custom_call.1} parent=1 // pred_check_branch
      %13 = sbr.rel (0) target = $region5
    $region4: #{tpu_custom_call.1} parent=1 // pred_region
      _
    $region5: #{tpu_custom_call.1} parent=1 // pred_fallthru
      _
    // Predicated region
    $region6: #{tpu_custom_call.1} parent=1 // pred_check
      _
    $region7: #{tpu_custom_call.1} parent=1 // pred_check_branch
      %15 = sbr.rel (0) target = $region9
    $region8: #{tpu_custom_call.1} parent=1 // pred_region
      %17 = vsyncadd [#allocation3], 0
      %s18 = sshll.u32 %s1, 4
      %s19 = int_to_ptr.hbm [resolvable:$true] %s18
      %s20 = sshll.u32 [#allocation2], 4
      %s21 = int_to_ptr.vmem [resolvable:$true] %s20
      %26 = dma.hbm_to_vmem [thread:$0]  %s19, 1024, %s21, [#allocation3], 64, 64, 4
    $region9: #{tpu_custom_call.1} parent=1 // pred_fallthru
      _
    // Predicated region
    $region10: #{tpu_custom_call.1} parent=1 // pred_check
      _
    $region11: #{tpu_custom_call.1} parent=1 // pred_check_branch
      %28 = sbr.rel (0) target = $region13
    $region12: #{tpu_custom_call.1} parent=1 // pred_region
      %30 = vsyncadd [#allocation6], 0
      %s31 = sshll.u32 %s2, 4
      %s32 = int_to_ptr.hbm [resolvable:$true] %s31
      %s33 = sshll.u32 [#allocation5], 4
      %s34 = int_to_ptr.vmem [resolvable:$true] %s33
      %39 = dma.hbm_to_vmem [thread:$0]  %s32, 1024, %s34, [#allocation6], 64, 64, 4
    $region13: #{tpu_custom_call.1} parent=1 // pred_fallthru
      _
    // Predicated region
    $region14: #{tpu_custom_call.1} parent=1 // pred_check
      _
    $region15: #{tpu_custom_call.1} parent=1 // pred_check_branch
      %41 = sbr.rel (0) target = $region17
    $region16: #{tpu_custom_call.1} parent=1 // pred_region
      _
    $region17: #{tpu_custom_call.1} parent=1 // pred_fallthru
      _
    // Predicated region
    $region18: #{tpu_custom_call.1} parent=1 // pred_check
      _
    $region19: #{tpu_custom_call.1} parent=1 // pred_check_branch
      %43 = sbr.rel (0) target = $region21
    $region20: #{tpu_custom_call.1} parent=1 // pred_region
      %45 = dma.done [#allocation3], 1024
    $region21: #{tpu_custom_call.1} parent=1 // pred_fallthru
      _
    // Predicated region
    $region22: #{tpu_custom_call.1} parent=1 // pred_check
      _
    $region23: #{tpu_custom_call.1} parent=1 // pred_check_branch
      %47 = sbr.rel (0) target = $region25
    $region24: #{tpu_custom_call.1} parent=1 // pred_region
      %49 = dma.done [#allocation6], 1024
    $region25: #{tpu_custom_call.1} parent=1 // pred_fallthru
      _
    %v50 = vld [vmem:[%s0] sm:$0xff]
    %v51 = vlaneseq
    %v52 = vand.u32 %v51, 127
    %53 = vset.pattern.permute.xlu0 0
    %54 = vperm.xlu0 %53, %v50
    %v55 = vpop.permute.xlu0 %54
    %vm56 = vcmp.ge.s32.totalorder %v52, %v55
    %57 = vset.pattern.permute.xlu0 1
    %58 = vperm.xlu0 %57, %v50
    %v59 = vpop.permute.xlu0 %58
    %vm60 = vcmp.lt.s32.totalorder %v52, %v59
    %vm61 = vmand %vm56, %vm60
    %v62 = vsel %vm61, 1, 0
    %v63 = vcvt.s32.f32 %v62
    %v64 = vpack.c.bf16 %v63, %v63
    %v65 = vld [vmem:[#allocation2] sm:$0xf]
    %v66 = vld [vmem:[#allocation2 + $0x4] sm:$0xf]
    %v67 = vld [vmem:[#allocation2 + $0x8] sm:$0xf]
    %v68 = vld [vmem:[#allocation2 + $0xc] sm:$0xf]
    %v69 = vld [vmem:[#allocation2 + $0x10] sm:$0xf]
    %v70 = vld [vmem:[#allocation2 + $0x14] sm:$0xf]
    %v71 = vld [vmem:[#allocation2 + $0x18] sm:$0xf]
    %v72 = vld [vmem:[#allocation2 + $0x1c] sm:$0xf]
    %v73 = vld [vmem:[#allocation2 + $0x20] sm:$0xf]
    %v74 = vld [vmem:[#allocation2 + $0x24] sm:$0xf]
    %v75 = vld [vmem:[#allocation2 + $0x28] sm:$0xf]
    %v76 = vld [vmem:[#allocation2 + $0x2c] sm:$0xf]
    %v77 = vld [vmem:[#allocation2 + $0x30] sm:$0xf]
    %v78 = vld [vmem:[#allocation2 + $0x34] sm:$0xf]
    %v79 = vld [vmem:[#allocation2 + $0x38] sm:$0xf]
    %v80 = vld [vmem:[#allocation2 + $0x3c] sm:$0xf]
    %v97 = vunpack.c.l.b16 %v65
    %v98 = vunpack.c.l.b16 %v66
    %v99 = vunpack.c.l.b16 %v67
    %v100 = vunpack.c.l.b16 %v68
    %v101 = vunpack.c.l.b16 %v69
    %v102 = vunpack.c.l.b16 %v70
    %v103 = vunpack.c.l.b16 %v71
    %v104 = vunpack.c.l.b16 %v72
    %v105 = vunpack.c.l.b16 %v73
    %v106 = vunpack.c.l.b16 %v74
    %v107 = vunpack.c.l.b16 %v75
    %v108 = vunpack.c.l.b16 %v76
    %v109 = vunpack.c.l.b16 %v77
    %v110 = vunpack.c.l.b16 %v78
    %v111 = vunpack.c.l.b16 %v79
    %v112 = vunpack.c.l.b16 %v80
    %v113 = vpack.c.b16 %v98, %v97
    %v114 = vpack.c.b16 %v100, %v99
    %v115 = vpack.c.b16 %v102, %v101
    %v116 = vpack.c.b16 %v104, %v103
    %v117 = vpack.c.b16 %v106, %v105
    %v118 = vpack.c.b16 %v108, %v107
    %v119 = vpack.c.b16 %v110, %v109
    %v120 = vpack.c.b16 %v112, %v111
    %129 = vmatpush.bf16.msra.mxu0 %v120
    %130 = vmatpush.bf16.msra.mxu0 %v119
    %131 = vmatpush.bf16.msra.mxu0 %v118
    %132 = vmatpush.bf16.msra.mxu0 %v117
    %133 = vmatpush.bf16.msra.mxu0 %v116
    %134 = vmatpush.bf16.msra.mxu0 %v115
    %135 = vmatpush.bf16.msra.mxu0 %v114
    %136 = vmatpush.bf16.msra.mxu0 %v113
    %137 = vmatmul.bf16.gmra.mxu0 %v64
    %v138 = vpop.f32.mrf.mxu0
    %v139 = vadd.f32 0.0, %v138
    %v140 = vpop.f32.mrf.mxu0
    %141 = vdwg.mxu0
    %142 = vrot.lane.b32.xlu0 %v50, 1
    %v143 = vpop.permute.xlu0 %142
    %v144 = vsub.s32 %v50, %v143
    %vm145 = vcmp.gt.s32.totalorder %v144, 1
    %v146 = vsel %vm145, %v144, 1
    %v147 = vcvt.s32.f32 %v146
    %v148 = vrcp.pop %v147
    %v149 = vmul.f32 %v147, %v148
    %v150 = vsub.f32 1.0, %v149
    %v151 = vmul.f32 %v148, %v150
    %v152 = vadd.f32 %v148, %v151
    %vm153 = vweird.f32 %v147
    %vm154 = vweird.f32 %v148
    %vm155 = vmor %vm153, %vm154
    %v156 = vsel %vm155, %v148, %v152
    %v157 = vand.u32 2147483647, %v147
    %vm158 = vcmp.eq.f32.partialorder %v157, 8.507059e+37
    %v159 = vand.u32 %v147, 2147483648
    %v160 = vor.u32 1.1754944e-38, %v159
    %v161 = vsel %vm158, %v160, %v156
    %v162 = vmul.f32 1.0, %v161
    %164 = vset.pattern.permute.xlu0 1
    %165 = vperm.xlu0 %164, %v162
    %v166 = vpop.permute.xlu0 %165
    %v168 = vmul.f32 %v139, %v166
    %v169 = vpack.c.bf16 %v168, %v168
    %v170 = vld [vmem:[#allocation5] sm:$0xf]
    %v171 = vld [vmem:[#allocation5 + $0x4] sm:$0xf]
    %v172 = vld [vmem:[#allocation5 + $0x8] sm:$0xf]
    %v173 = vld [vmem:[#allocation5 + $0xc] sm:$0xf]
    %v174 = vld [vmem:[#allocation5 + $0x10] sm:$0xf]
    %v175 = vld [vmem:[#allocation5 + $0x14] sm:$0xf]
    %v176 = vld [vmem:[#allocation5 + $0x18] sm:$0xf]
    %v177 = vld [vmem:[#allocation5 + $0x1c] sm:$0xf]
    %v178 = vld [vmem:[#allocation5 + $0x20] sm:$0xf]
    %v179 = vld [vmem:[#allocation5 + $0x24] sm:$0xf]
    %v180 = vld [vmem:[#allocation5 + $0x28] sm:$0xf]
    %v181 = vld [vmem:[#allocation5 + $0x2c] sm:$0xf]
    %v182 = vld [vmem:[#allocation5 + $0x30] sm:$0xf]
    %v183 = vld [vmem:[#allocation5 + $0x34] sm:$0xf]
    %v184 = vld [vmem:[#allocation5 + $0x38] sm:$0xf]
    %v185 = vld [vmem:[#allocation5 + $0x3c] sm:$0xf]
    %v186 = vld [vmem:[%s3] sm:$0x1]
    %v188 = vperm.slane %v186, 0
    %v206 = vunpack.c.l.b16 %v170
    %v207 = vunpack.c.l.b16 %v171
    %v208 = vunpack.c.l.b16 %v172
    %v209 = vunpack.c.l.b16 %v173
    %v210 = vunpack.c.l.b16 %v174
    %v211 = vunpack.c.l.b16 %v175
    %v212 = vunpack.c.l.b16 %v176
    %v213 = vunpack.c.l.b16 %v177
    %v214 = vunpack.c.l.b16 %v178
    %v215 = vunpack.c.l.b16 %v179
    %v216 = vunpack.c.l.b16 %v180
    %v217 = vunpack.c.l.b16 %v181
    %v218 = vunpack.c.l.b16 %v182
    %v219 = vunpack.c.l.b16 %v183
    %v220 = vunpack.c.l.b16 %v184
    %v221 = vunpack.c.l.b16 %v185
    %v222 = vpack.c.b16 %v207, %v206
    %v223 = vpack.c.b16 %v209, %v208
    %v224 = vpack.c.b16 %v211, %v210
    %v225 = vpack.c.b16 %v213, %v212
    %v226 = vpack.c.b16 %v215, %v214
    %v227 = vpack.c.b16 %v217, %v216
    %v228 = vpack.c.b16 %v219, %v218
    %v229 = vpack.c.b16 %v221, %v220
    %238 = vmatpush.bf16.msra.mxu0 %v229
    %239 = vmatpush.bf16.msra.mxu0 %v228
    %240 = vmatpush.bf16.msra.mxu0 %v227
    %241 = vmatpush.bf16.msra.mxu0 %v226
    %242 = vmatpush.bf16.msra.mxu0 %v225
    %243 = vmatpush.bf16.msra.mxu0 %v224
    %244 = vmatpush.bf16.msra.mxu0 %v223
    %245 = vmatpush.bf16.msra.mxu0 %v222
    %246 = vmatmul.bf16.gmra.mxu0 %v169
    %v247 = vpop.f32.mrf.mxu0
    %v248 = vadd.f32 %v188, %v247
    %v249 = vpop.f32.mrf.mxu0
    %250 = vdwg.mxu0
    %251 = vst [vmem:[#allocation7] sm:$0xff] %v248
    // Predicated region
    $region26: #{tpu_custom_call.1} parent=1 // pred_check
      _
    $region27: #{tpu_custom_call.1} parent=1 // pred_check_branch
      %253 = sbr.rel (0) target = $region29
    $region28: #{tpu_custom_call.1} parent=1 // pred_region
      %255 = vsyncadd [#allocation4], 0
      %s257 = sshll.u32 [#allocation7], 4
      %s258 = int_to_ptr.vmem [resolvable:$true] %s257
      %s259 = sshll.u32 %s4, 4
      %s260 = int_to_ptr.hbm [resolvable:$true] %s259
      %262 = dma.vmem_to_hbm [thread:$0]  %s258, 128, %s260, [#allocation4]
    $region29: #{tpu_custom_call.1} parent=1 // pred_fallthru
      _
    // Predicated region
    $region30: #{tpu_custom_call.1} parent=1 // pred_check
      _
    $region31: #{tpu_custom_call.1} parent=1 // pred_check_branch
      %264 = sbr.rel (0) target = $region33
    $region32: #{tpu_custom_call.1} parent=1 // pred_region
      %266 = dma.done [#allocation4], 128
    $region33: #{tpu_custom_call.1} parent=1 // pred_fallthru
      _
    %267 = vsyncpa [#allocation3], 1
    %268 = vsyncpa [#allocation6], 1
    %269 = vsyncpa [#allocation4], 1

// kernel: tpu_custom_call.1
$region0: #{tpu_custom_call.1}
  #allocation0 [shape = 'u32[]', space=smem, size = 0x4, offset = 0x4, fixed_abs, tag = 'smem constant byte address 0x4 - core index']
  #allocation1 [shape = 'u32[72,128]{1,0:T(1,128)}', space=vmem, size = 0x9000, scoped, tag = 'internal scratch']
  %s0 = inlined_call_operand.vmem [shape: s32[8,2], index: 0, kind: input, shape index: {}]
  %s1 = inlined_call_operand.hbm [shape: bf16[128,128], index: 1, kind: input, shape index: {}]
  %s2 = inlined_call_operand.hbm [shape: bf16[128,128], index: 2, kind: input, shape index: {}]
  %s3 = inlined_call_operand.vmem [shape: f32[1,128], index: 3, kind: input, shape index: {}]
  %s4 = inlined_call_operand.hbm [shape: f32[8,128], index: 4, kind: output, shape index: {}]
  %s5 = sld [smem:[#allocation0]]
  $region34: #{tpu_custom_call.1} parent=0
    _
  %s7 = ssub.s32 1, %s5
  %s8 = scalar_select 0, %s7, %s5
  $region1: #{tpu_custom_call.1} parent=0
    #allocation2 [shape = 'u8[32768]{0}', space=vmem, size = 0x8000, scoped, tag = 'input window, operand 1, single buffered']
    #allocation3 [shape = 's32[1]{0}', space=sflag, size = 0x4, scoped, tag = 'scoped memory for tpu_custom_call.1']
    #allocation4 [shape = 's32[1]{0}', space=sflag, size = 0x4, scoped, tag = 'scoped memory for tpu_custom_call.1']
    #allocation5 [shape = 'u8[32768]{0}', space=vmem, size = 0x8000, scoped, tag = 'input window, operand 2, single buffered']
    #allocation6 [shape = 's32[1]{0}', space=sflag, size = 0x4, scoped, tag = 'scoped memory for tpu_custom_call.1']
    #allocation7 [shape = 'u8[4096]{0}', space=vmem, size = 0x1000, scoped, tag = 'output window, operand 0, single buffered']
    %9 = vsyncpa [#allocation3], 0
    %10 = vsyncpa [#allocation6], 0
    %11 = vsyncpa [#allocation4], 0
    // Predicated region
    $region2: #{tpu_custom_call.1} parent=1 // pred_check
      _
    $region3: #{tpu_custom_call.1} parent=1 // pred_check_branch
      %13 = sbr.rel (0) target = $region5
    $region4: #{tpu_custom_call.1} parent=1 // pred_region
      _
    $region5: #{tpu_custom_call.1} parent=1 // pred_fallthru
      _
    // Predicated region
    $region6: #{tpu_custom_call.1} parent=1 // pred_check
      _
    $region7: #{tpu_custom_call.1} parent=1 // pred_check_branch
      %15 = sbr.rel (0) target = $region9
    $region8: #{tpu_custom_call.1} parent=1 // pred_region
      %17 = vsyncadd [#allocation3], 0
      %s18 = sshll.u32 %s1, 4
      %s19 = int_to_ptr.hbm [resolvable:$true] %s18
      %s20 = sshll.u32 [#allocation2], 4
      %s21 = int_to_ptr.vmem [resolvable:$true] %s20
      %26 = dma.hbm_to_vmem [thread:$0]  %s19, 1024, %s21, [#allocation3], 64, 64, 4
    $region9: #{tpu_custom_call.1} parent=1 // pred_fallthru
      _
    // Predicated region
    $region10: #{tpu_custom_call.1} parent=1 // pred_check
      _
    $region11: #{tpu_custom_call.1} parent=1 // pred_check_branch
      %28 = sbr.rel (0) target = $region13
    $region12: #{tpu_custom_call.1} parent=1 // pred_region
      %30 = vsyncadd [#allocation6], 0
      %s31 = sshll.u32 %s2, 4
      %s32 = int_to_ptr.hbm [resolvable:$true] %s31
      %s33 = sshll.u32 [#allocation5], 4
      %s34 = int_to_ptr.vmem [resolvable:$true] %s33
      %39 = dma.hbm_to_vmem [thread:$0]  %s32, 1024, %s34, [#allocation6], 64, 64, 4
    $region13: #{tpu_custom_call.1} parent=1 // pred_fallthru
      _
    // Predicated region
    $region14: #{tpu_custom_call.1} parent=1 // pred_check
      _
    $region15: #{tpu_custom_call.1} parent=1 // pred_check_branch
      %41 = sbr.rel (0) target = $region17
    $region16: #{tpu_custom_call.1} parent=1 // pred_region
      _
    $region17: #{tpu_custom_call.1} parent=1 // pred_fallthru
      _
    // Predicated region
    $region18: #{tpu_custom_call.1} parent=1 // pred_check
      _
    $region19: #{tpu_custom_call.1} parent=1 // pred_check_branch
      %43 = sbr.rel (0) target = $region21
    $region20: #{tpu_custom_call.1} parent=1 // pred_region
      %45 = dma.done [#allocation3], 1024
    $region21: #{tpu_custom_call.1} parent=1 // pred_fallthru
      _
    // Predicated region
    $region22: #{tpu_custom_call.1} parent=1 // pred_check
      _
    $region23: #{tpu_custom_call.1} parent=1 // pred_check_branch
      %47 = sbr.rel (0) target = $region25
    $region24: #{tpu_custom_call.1} parent=1 // pred_region
      %49 = dma.done [#allocation6], 1024
    $region25: #{tpu_custom_call.1} parent=1 // pred_fallthru
      _
    %v50 = vld [vmem:[%s0] sm:$0xff]
    %v51 = vlaneseq
    %v52 = vand.u32 %v51, 127
    %53 = vset.pattern.permute.xlu0 0
    %54 = vperm.xlu0 %53, %v50
    %v55 = vpop.permute.xlu0 %54
    %vm56 = vcmp.ge.s32.totalorder %v52, %v55
    %57 = vset.pattern.permute.xlu0 1
    %58 = vperm.xlu0 %57, %v50
    %v59 = vpop.permute.xlu0 %58
    %vm60 = vcmp.lt.s32.totalorder %v52, %v59
    %vm61 = vmand %vm56, %vm60
    %v62 = vsel %vm61, 1, 0
    %v63 = vcvt.s32.f32 %v62
    %v64 = vpack.c.bf16 %v63, %v63
    %v65 = vld [vmem:[#allocation2] sm:$0xf]
    %v66 = vld [vmem:[#allocation2 + $0x4] sm:$0xf]
    %v67 = vld [vmem:[#allocation2 + $0x8] sm:$0xf]
    %v68 = vld [vmem:[#allocation2 + $0xc] sm:$0xf]
    %v69 = vld [vmem:[#allocation2 + $0x10] sm:$0xf]
    %v70 = vld [vmem:[#allocation2 + $0x14] sm:$0xf]
    %v71 = vld [vmem:[#allocation2 + $0x18] sm:$0xf]
    %v72 = vld [vmem:[#allocation2 + $0x1c] sm:$0xf]
    %v73 = vld [vmem:[#allocation2 + $0x20] sm:$0xf]
    %v74 = vld [vmem:[#allocation2 + $0x24] sm:$0xf]
    %v75 = vld [vmem:[#allocation2 + $0x28] sm:$0xf]
    %v76 = vld [vmem:[#allocation2 + $0x2c] sm:$0xf]
    %v77 = vld [vmem:[#allocation2 + $0x30] sm:$0xf]
    %v78 = vld [vmem:[#allocation2 + $0x34] sm:$0xf]
    %v79 = vld [vmem:[#allocation2 + $0x38] sm:$0xf]
    %v80 = vld [vmem:[#allocation2 + $0x3c] sm:$0xf]
    %v97 = vunpack.c.l.b16 %v65
    %v98 = vunpack.c.l.b16 %v66
    %v99 = vunpack.c.l.b16 %v67
    %v100 = vunpack.c.l.b16 %v68
    %v101 = vunpack.c.l.b16 %v69
    %v102 = vunpack.c.l.b16 %v70
    %v103 = vunpack.c.l.b16 %v71
    %v104 = vunpack.c.l.b16 %v72
    %v105 = vunpack.c.l.b16 %v73
    %v106 = vunpack.c.l.b16 %v74
    %v107 = vunpack.c.l.b16 %v75
    %v108 = vunpack.c.l.b16 %v76
    %v109 = vunpack.c.l.b16 %v77
    %v110 = vunpack.c.l.b16 %v78
    %v111 = vunpack.c.l.b16 %v79
    %v112 = vunpack.c.l.b16 %v80
    %v113 = vpack.c.b16 %v98, %v97
    %v114 = vpack.c.b16 %v100, %v99
    %v115 = vpack.c.b16 %v102, %v101
    %v116 = vpack.c.b16 %v104, %v103
    %v117 = vpack.c.b16 %v106, %v105
    %v118 = vpack.c.b16 %v108, %v107
    %v119 = vpack.c.b16 %v110, %v109
    %v120 = vpack.c.b16 %v112, %v111
    %129 = vmatpush.bf16.msra.mxu0 %v120
    %130 = vmatpush.bf16.msra.mxu0 %v119
    %131 = vmatpush.bf16.msra.mxu0 %v118
    %132 = vmatpush.bf16.msra.mxu0 %v117
    %133 = vmatpush.bf16.msra.mxu0 %v116
    %134 = vmatpush.bf16.msra.mxu0 %v115
    %135 = vmatpush.bf16.msra.mxu0 %v114
    %136 = vmatpush.bf16.msra.mxu0 %v113
    %137 = vmatmul.bf16.gmra.mxu0 %v64
    %v138 = vpop.f32.mrf.mxu0
    %v139 = vadd.f32 0.0, %v138
    %v140 = vpop.f32.mrf.mxu0
    %141 = vdwg.mxu0
    %142 = vrot.lane.b32.xlu0 %v50, 1
    %v143 = vpop.permute.xlu0 %142
    %v144 = vsub.s32 %v50, %v143
    %vm145 = vcmp.gt.s32.totalorder %v144, 1
    %v146 = vsel %vm145, %v144, 1
    %v147 = vcvt.s32.f32 %v146
    %v148 = vrcp.pop %v147
    %v149 = vmul.f32 %v147, %v148
    %v150 = vsub.f32 1.0, %v149
    %v151 = vmul.f32 %v148, %v150
    %v152 = vadd.f32 %v148, %v151
    %vm153 = vweird.f32 %v147
    %vm154 = vweird.f32 %v148
    %vm155 = vmor %vm153, %vm154
    %v156 = vsel %vm155, %v148, %v152
    %v157 = vand.u32 2147483647, %v147
    %vm158 = vcmp.eq.f32.partialorder %v157, 8.507059e+37
    %v159 = vand.u32 %v147, 2147483648
    %v160 = vor.u32 1.1754944e-38, %v159
    %v161 = vsel %vm158, %v160, %v156
    %v162 = vmul.f32 1.0, %v161
    %164 = vset.pattern.permute.xlu0 1
    %165 = vperm.xlu0 %164, %v162
    %v166 = vpop.permute.xlu0 %165
    %v168 = vmul.f32 %v139, %v166
    %v169 = vpack.c.bf16 %v168, %v168
    %v170 = vld [vmem:[#allocation5] sm:$0xf]
    %v171 = vld [vmem:[#allocation5 + $0x4] sm:$0xf]
    %v172 = vld [vmem:[#allocation5 + $0x8] sm:$0xf]
    %v173 = vld [vmem:[#allocation5 + $0xc] sm:$0xf]
    %v174 = vld [vmem:[#allocation5 + $0x10] sm:$0xf]
    %v175 = vld [vmem:[#allocation5 + $0x14] sm:$0xf]
    %v176 = vld [vmem:[#allocation5 + $0x18] sm:$0xf]
    %v177 = vld [vmem:[#allocation5 + $0x1c] sm:$0xf]
    %v178 = vld [vmem:[#allocation5 + $0x20] sm:$0xf]
    %v179 = vld [vmem:[#allocation5 + $0x24] sm:$0xf]
    %v180 = vld [vmem:[#allocation5 + $0x28] sm:$0xf]
    %v181 = vld [vmem:[#allocation5 + $0x2c] sm:$0xf]
    %v182 = vld [vmem:[#allocation5 + $0x30] sm:$0xf]
    %v183 = vld [vmem:[#allocation5 + $0x34] sm:$0xf]
    %v184 = vld [vmem:[#allocation5 + $0x38] sm:$0xf]
    %v185 = vld [vmem:[#allocation5 + $0x3c] sm:$0xf]
    %v186 = vld [vmem:[%s3] sm:$0x1]
    %v188 = vperm.slane %v186, 0
    %v206 = vunpack.c.l.b16 %v170
    %v207 = vunpack.c.l.b16 %v171
    %v208 = vunpack.c.l.b16 %v172
    %v209 = vunpack.c.l.b16 %v173
    %v210 = vunpack.c.l.b16 %v174
    %v211 = vunpack.c.l.b16 %v175
    %v212 = vunpack.c.l.b16 %v176
    %v213 = vunpack.c.l.b16 %v177
    %v214 = vunpack.c.l.b16 %v178
    %v215 = vunpack.c.l.b16 %v179
    %v216 = vunpack.c.l.b16 %v180
    %v217 = vunpack.c.l.b16 %v181
    %v218 = vunpack.c.l.b16 %v182
    %v219 = vunpack.c.l.b16 %v183
    %v220 = vunpack.c.l.b16 %v184
    %v221 = vunpack.c.l.b16 %v185
    %v222 = vpack.c.b16 %v207, %v206
    %v223 = vpack.c.b16 %v209, %v208
    %v224 = vpack.c.b16 %v211, %v210
    %v225 = vpack.c.b16 %v213, %v212
    %v226 = vpack.c.b16 %v215, %v214
    %v227 = vpack.c.b16 %v217, %v216
    %v228 = vpack.c.b16 %v219, %v218
    %v229 = vpack.c.b16 %v221, %v220
    %238 = vmatpush.bf16.msra.mxu0 %v229
    %239 = vmatpush.bf16.msra.mxu0 %v228
    %240 = vmatpush.bf16.msra.mxu0 %v227
    %241 = vmatpush.bf16.msra.mxu0 %v226
    %242 = vmatpush.bf16.msra.mxu0 %v225
    %243 = vmatpush.bf16.msra.mxu0 %v224
    %244 = vmatpush.bf16.msra.mxu0 %v223
    %245 = vmatpush.bf16.msra.mxu0 %v222
    %246 = vmatmul.bf16.gmra.mxu0 %v169
    %v247 = vpop.f32.mrf.mxu0
    %v248 = vadd.f32 %v188, %v247
    %v249 = vpop.f32.mrf.mxu0
    %250 = vdwg.mxu0
    %251 = vst [vmem:[#allocation7] sm:$0xff] %v248
    // Predicated region
    $region26: #{tpu_custom_call.1} parent=1 // pred_check
      _
    $region27: #{tpu_custom_call.1} parent=1 // pred_check_branch
      %253 = sbr.rel (0) target = $region29
    $region28: #{tpu_custom_call.1} parent=1 // pred_region
      %255 = vsyncadd [#allocation4], 0
      %s257 = sshll.u32 [#allocation7], 4
      %s258 = int_to_ptr.vmem [resolvable:$true] %s257
      %s259 = sshll.u32 %s4, 4
      %s260 = int_to_ptr.hbm [resolvable:$true] %s259
      %262 = dma.vmem_to_hbm [thread:$0]  %s258, 128, %s260, [#allocation4]
    $region29: #{tpu_custom_call.1} parent=1 // pred_fallthru
      _
    // Predicated region
    $region30: #{tpu_custom_call.1} parent=1 // pred_check
      _
    $region31: #{tpu_custom_call.1} parent=1 // pred_check_branch
      %264 = sbr.rel (0) target = $region33
    $region32: #{tpu_custom_call.1} parent=1 // pred_region
      %266 = dma.done [#allocation4], 128
    $region33: #{tpu_custom_call.1} parent=1 // pred_fallthru
      _
    %267 = vsyncpa [#allocation3], 1
    %268 = vsyncpa [#allocation6], 1
    %269 = vsyncpa [#allocation4], 1

</llo_original>
